<compile_context>
chip_gen: v5e
topology: v5e:2x2
jax: 0.10.0
libtpu: 0.0.40
codegen_flags: <defaults>
</compile_context>

<pallas_src>
import jax
import jax.numpy as jnp
from jax.experimental import pallas as pl
from jax.experimental.pallas import tpu as pltpu


# --------------------------------------------------------------------------- #
# Kernel
# --------------------------------------------------------------------------- #
def _make_fm_kernel(num_fields, embed_dim, reduce_sum):
    F, D = num_fields, embed_dim

    def kernel(x_ref, o_ref):
        # x_ref: (TB, F*D) lane-dense VMEM tile.
        # Per-field accumulation of the field sum on a (TB, D) f32 vreg set.
        xf = x_ref[:, 0:D].astype(jnp.float32)
        s = xf
        if not reduce_sum:
            sq = xf * xf
        for f in range(1, F):  # F is small & static -> fully unrolled
            xf = x_ref[:, f * D:(f + 1) * D].astype(jnp.float32)
            s = s + xf
            if not reduce_sum:
                sq = sq + xf * xf

        if reduce_sum:
            # sum_d sum_f x_{f,d}^2 == sum over the whole (TB, F*D) tile of x^2:
            # one full-width VPU multiply + one lane reduction (no per-field
            # sub-vreg lane slices needed for the square term).
            x32 = x_ref[...].astype(jnp.float32)
            total_sq = jnp.sum(x32 * x32, axis=1, keepdims=True)   # (TB, 1)
            sq_of_sum = jnp.sum(s * s, axis=1, keepdims=True)      # (TB, 1)
            o_ref[...] = (0.5 * (sq_of_sum - total_sq)).astype(o_ref.dtype)
        else:
            ix = s * s - sq                                        # (TB, D)
            o_ref[...] = (0.5 * ix).astype(o_ref.dtype)

    return kernel


# --------------------------------------------------------------------------- #
# Tiling policy
# --------------------------------------------------------------------------- #
def _sublane_multiple(itemsize):
    # f32 -> 8, bf16 -> 16, int8/fp8 -> 32 (sub-32-bit dtypes pack along sublanes).
    return max(8, 32 // int(itemsize))


def _vmem_capacity_bytes():
    try:
        cap = getattr(pltpu.get_tpu_info(), "vmem_capacity_bytes", None)
        if cap:
            return int(cap)
    except Exception:
        pass
    return 64 * 1024 * 1024  # conservative default (v7x per-TC VMEM)


def _needed_vmem_bytes(block_batch, F, D, out_cols, itemsize):
    lanes_in = pl.cdiv(F * D, 128) * 128
    lanes_out = pl.cdiv(out_cols, 128) * 128
    lanes_d = pl.cdiv(D, 128) * 128
    in_bytes = 2 * block_batch * lanes_in * itemsize    # double-buffered input
    out_bytes = 2 * block_batch * lanes_out * itemsize  # double-buffered output
    tmp_bytes = 4 * block_batch * lanes_d * 4           # f32 s / sq / ix / upcast
    return in_bytes + out_bytes + tmp_bytes


def _auto_block_batch(B, F, D, itemsize, target_tile_bytes, sub):
    """Batch tile: as big as the per-generation byte target allows (rounded to
    the dtype's sublane multiple). No minimum-grid-steps clamp; for batches
    that fit a single target tile but are still sizeable, split into 2 even
    steps so v7x's two TensorCores can both be used."""
    lanes_padded = pl.cdiv(F * D, 128) * 128  # lane padding of the VMEM tile
    rows = max(sub, (target_tile_bytes // (lanes_padded * itemsize)) // sub * sub)
    if rows < B:
        return int(rows)
    # Whole batch fits under the tile target.
    full_bytes = B * lanes_padded * itemsize
    if full_bytes > (2 << 20) and B >= 2 * sub:
        half = pl.cdiv(pl.cdiv(B, 2), sub) * sub
        if half < B:
            return int(half)   # 2 even-ish steps -> dual-TC sharding on v7x
    return int(B)              # small batch: single-step fast path


# --------------------------------------------------------------------------- #
# Wrapper
# --------------------------------------------------------------------------- #
def factorization_machine(x, reduce_sum=True, block_batch=None):
    """Pallas TPU FactorizationMachine forward.

    x: (batch, num_fields, embed_dim) float array.
    Returns (batch, 1) if reduce_sum else (batch, embed_dim).
    """
    B, F, D = x.shape
    itemsize = jnp.dtype(x.dtype).itemsize
    out_cols = 1 if reduce_sum else D
    sub = _sublane_multiple(itemsize)

    vmem_cap = _vmem_capacity_bytes()
    # 48 MiB on v7x (64 MiB physical), 64 MiB on v5e/v6e (128 MiB physical).
    vmem_limit = int(min(vmem_cap * 3 // 4, 64 << 20))
    vmem_budget = vmem_limit - (4 << 20)  # headroom for Mosaic internals
    target_tile_bytes = vmem_cap // 8     # ~8 MiB on v7x, ~16 MiB on v5e/v6e

    if block_batch is None:
        block_batch = _auto_block_batch(B, F, D, itemsize, target_tile_bytes, sub)
    else:
        block_batch = int(min(block_batch, B))
        if block_batch < B:
            block_batch = min(pl.cdiv(block_batch, sub) * sub, B)

    # Shrink the tile if double-buffered tiles + f32 intermediates would not
    # fit the VMEM budget (binding constraint on v7x's 64 MiB VMEM).
    while (block_batch > sub
           and _needed_vmem_bytes(block_batch, F, D, out_cols, itemsize) > vmem_budget):
        block_batch = max(sub, (block_batch // 2) // sub * sub)

    # Lane-dense 2-D view of the contiguous (B, F, D) tensor (free reshape).
    x2d = x.reshape(B, F * D)

    # No input padding: Pallas handles the partial edge block. Out-of-bounds
    # rows of the last input tile are undefined, but each output row depends
    # only on its own input row and out-of-bounds output rows are masked on
    # writeback, so they are never observed.
    grid = (pl.cdiv(B, block_batch),)
    in_spec = pl.BlockSpec((block_batch, F * D), lambda i: (i, 0))
    out_spec = pl.BlockSpec((block_batch, out_cols), lambda i: (i, 0))
    out_shape = jax.ShapeDtypeStruct((B, out_cols), x.dtype)

    cost = pl.CostEstimate(
        flops=3 * B * F * D + 3 * B * D,
        transcendentals=0,
        bytes_accessed=B * F * D * itemsize + B * out_cols * itemsize,
    )

    return pl.pallas_call(
        _make_fm_kernel(F, D, reduce_sum),
        out_shape=out_shape,
        grid_spec=pltpu.PrefetchScalarGridSpec(
            num_scalar_prefetch=0,
            grid=grid,
            in_specs=[in_spec],
            out_specs=out_spec,
        ),
        compiler_params=pltpu.CompilerParams(
            dimension_semantics=("parallel",),
            vmem_limit_bytes=vmem_limit,
        ),
        cost_estimate=cost,
    )(x2d)


# --------------------------------------------------------------------------- #
# Reference + tests
# --------------------------------------------------------------------------- #
def _fm_ref(x, reduce_sum=True):
    square_of_sum = jnp.sum(x, axis=1) ** 2
    sum_of_square = jnp.sum(x ** 2, axis=1)
    ix = square_of_sum - sum_of_square
    if reduce_sum:
        ix = jnp.sum(ix, axis=1, keepdims=True)
    return 0.5 * ix


if __name__ == "__main__":
    key = jax.random.PRNGKey(0)

    # Small shapes consistent with the module: (batch, num_fields, embed_dim).
    B, F, D = 10, 4, 32
    x = jax.random.normal(key, (B, F, D), dtype=jnp.float32)

    # reduce_sum=True path (default module config).
    out = jax.block_until_ready(factorization_machine(x, reduce_sum=True))
    ref = _fm_ref(x, reduce_sum=True)
    assert out.shape == (B, 1), out.shape
    assert jnp.allclose(out, ref, atol=1e-5, rtol=1e-5), "reduce_sum=True mismatch"

    # reduce_sum=False path.
    out2 = jax.block_until_ready(factorization_machine(x, reduce_sum=False))
    ref2 = _fm_ref(x, reduce_sum=False)
    assert out2.shape == (B, D), out2.shape
    assert jnp.allclose(out2, ref2, atol=1e-5, rtol=1e-5), "reduce_sum=False mismatch"

    # Explicit block_batch with a divisible batch (multi-step grid, no padding).
    B2 = 32
    x2 = jax.random.normal(jax.random.PRNGKey(0), (B2, F, D), dtype=jnp.float32)
    out3 = jax.block_until_ready(
        factorization_machine(x2, reduce_sum=True, block_batch=16))
    assert jnp.allclose(out3, _fm_ref(x2, True), atol=1e-5, rtol=1e-5), \
        "explicit block_batch mismatch"

    # Ragged batch with a multi-step grid: exercises the un-padded partial
    # edge block (masked output writeback) path.
    B3 = 50
    x3 = jax.random.normal(jax.random.PRNGKey(1), (B3, F, D), dtype=jnp.float32)
    out4 = jax.block_until_ready(
        factorization_machine(x3, reduce_sum=True, block_batch=16))
    assert out4.shape == (B3, 1), out4.shape
    assert jnp.allclose(out4, _fm_ref(x3, True), atol=1e-5, rtol=1e-5), \
        "ragged edge-block mismatch"

    # bf16 input (dtype-aware sublane rounding); f32 accumulation in-kernel.
    xb = x3.astype(jnp.bfloat16)
    out5 = jax.block_until_ready(
        factorization_machine(xb, reduce_sum=True, block_batch=16))
    ref5 = _fm_ref(xb.astype(jnp.float32), True)
    assert jnp.allclose(out5.astype(jnp.float32), ref5, rtol=2e-2, atol=0.5), \
        "bf16 mismatch"

    print("KERNEL_OK")
</pallas_src>

<mosaic_0001>
module attributes {stable_mosaic.version = 11 : i64} {
  func.func @kernel(%arg0: i32, %arg1: memref<10x128xf32, #tpu.memory_space<vmem>>, %arg2: memref<10x1xf32, #tpu.memory_space<vmem>>) attributes {dimension_semantics = [#tpu.dimension_semantics<parallel>], iteration_bounds = array<i64: 1>, scalar_prefetch = 0 : i64, scratch_operands = 0 : i64, tpu.core_type = #tpu.core_type<tc>, window_params = [{transform_indices = @transform_0, window_bounds = array<i64: 10, 128>}, {transform_indices = @transform_1, window_bounds = array<i64: 10, 1>}]} {
    %c0 = arith.constant 0 : index
    %c0_0 = arith.constant 0 : index
    %0 = vector.load %arg1[%c0, %c0_0] : memref<10x128xf32, #tpu.memory_space<vmem>>, vector<10x32xf32>
    %c0_1 = arith.constant 0 : index
    %c32 = arith.constant 32 : index
    %1 = vector.load %arg1[%c0_1, %c32] : memref<10x128xf32, #tpu.memory_space<vmem>>, vector<10x32xf32>
    %2 = arith.addf %0, %1 : vector<10x32xf32>
    %c0_2 = arith.constant 0 : index
    %c64 = arith.constant 64 : index
    %3 = vector.load %arg1[%c0_2, %c64] : memref<10x128xf32, #tpu.memory_space<vmem>>, vector<10x32xf32>
    %4 = arith.addf %2, %3 : vector<10x32xf32>
    %c0_3 = arith.constant 0 : index
    %c96 = arith.constant 96 : index
    %5 = vector.load %arg1[%c0_3, %c96] : memref<10x128xf32, #tpu.memory_space<vmem>>, vector<10x32xf32>
    %6 = arith.addf %4, %5 : vector<10x32xf32>
    %c0_4 = arith.constant 0 : index
    %c0_5 = arith.constant 0 : index
    %7 = vector.load %arg1[%c0_4, %c0_5] : memref<10x128xf32, #tpu.memory_space<vmem>>, vector<10x128xf32>
    %8 = arith.mulf %7, %7 : vector<10x128xf32>
    %cst = arith.constant dense<0.000000e+00> : vector<10xf32>
    %9 = vector.multi_reduction <add>, %8, %cst [1] : vector<10x128xf32> to vector<10xf32>
    %10 = vector.shape_cast %9 : vector<10xf32> to vector<10x1xf32>
    %11 = arith.mulf %6, %6 : vector<10x32xf32>
    %cst_6 = arith.constant dense<0.000000e+00> : vector<10xf32>
    %12 = vector.multi_reduction <add>, %11, %cst_6 [1] : vector<10x32xf32> to vector<10xf32>
    %13 = vector.shape_cast %12 : vector<10xf32> to vector<10x1xf32>
    %14 = arith.subf %13, %10 : vector<10x1xf32>
    %cst_7 = arith.constant 5.000000e-01 : f32
    %15 = vector.broadcast %cst_7 : f32 to vector<10x1xf32>
    %16 = arith.mulf %15, %14 : vector<10x1xf32>
    %c0_8 = arith.constant 0 : index
    %c0_9 = arith.constant 0 : index
    %17 = vector.load %arg2[%c0_8, %c0_9] : memref<10x1xf32, #tpu.memory_space<vmem>>, vector<10x1xf32>
    tpu.vector_store %arg2[%c0_8, %c0_9], %16 {strides = array<i32>} : memref<10x1xf32, #tpu.memory_space<vmem>>, vector<10x1xf32>,
    return
  }
  func.func @transform_0(%arg0: i32) -> (i32, i32) {
    %c0_i32 = arith.constant 0 : i32
    %c0_i32_0 = arith.constant 0 : i32
    return %arg0, %c0_i32 : i32, i32
  }
  func.func @transform_1(%arg0: i32) -> (i32, i32) {
    %c0_i32 = arith.constant 0 : i32
    %c0_i32_0 = arith.constant 0 : i32
    return %arg0, %c0_i32 : i32, i32
  }
}

</mosaic_0001>

<llo_original>
// kernel: tpu_custom_call.1
$region0: #{tpu_custom_call.1}
  #allocation0 [shape = 'u32[]', space=smem, size = 0x4, offset = 0x4, fixed_abs, tag = 'smem constant byte address 0x4 - core index']
  #allocation1 [shape = 'u32[72,128]{1,0:T(1,128)}', space=vmem, size = 0x9000, scoped, tag = 'internal scratch']
  %s0 = inlined_call_operand.hbm [shape: f32[10,128], index: 0, kind: input, shape index: {}]
  %s1 = inlined_call_operand.vmem [shape: f32[10,1], index: 1, kind: output, shape index: {}]
  %s2 = sld [smem:[#allocation0]]
  $region18: #{tpu_custom_call.1} parent=0
    _
  %s4 = ssub.s32 1, %s2
  %s5 = scalar_select 0, %s4, %s2
  $region1: #{tpu_custom_call.1} parent=0
    #allocation2 [shape = 'u8[8192]{0}', space=vmem, size = 0x2000, scoped, tag = 'input window, operand 0, single buffered']
    #allocation3 [shape = 's32[1]{0}', space=sflag, size = 0x4, scoped, tag = 'scoped memory for tpu_custom_call.1']
    %6 = vsyncpa [#allocation3], 0
    // Predicated region
    $region2: #{tpu_custom_call.1} parent=1 // pred_check
      _
    $region3: #{tpu_custom_call.1} parent=1 // pred_check_branch
      %8 = sbr.rel (0) target = $region5
    $region4: #{tpu_custom_call.1} parent=1 // pred_region
      %10 = vsyncadd [#allocation3], 0
      %s11 = sshll.u32 %s0, 4
      %s12 = int_to_ptr.hbm [resolvable:$true] %s11
      %s13 = sshll.u32 [#allocation2], 4
      %s14 = int_to_ptr.vmem [resolvable:$true] %s13
      %19 = dma.hbm_to_vmem [thread:$0]  %s12, 256, %s14, [#allocation3], 128, 128, 8
    $region5: #{tpu_custom_call.1} parent=1 // pred_fallthru
      _
    // Predicated region
    $region6: #{tpu_custom_call.1} parent=1 // pred_check
      _
    $region7: #{tpu_custom_call.1} parent=1 // pred_check_branch
      %21 = sbr.rel (0) target = $region9
    $region8: #{tpu_custom_call.1} parent=1 // pred_region
      %23 = dma.done [#allocation3], 256
    $region9: #{tpu_custom_call.1} parent=1 // pred_fallthru
      _
    %v24 = vld [vmem:[#allocation2] sm:$0xff]
    %v25 = vld [vmem:[#allocation2 + $0x8] sm:$0x3]
    %28 = vrot.lane.b32.xlu0 %v24, 96
    %v29 = vpop.permute.xlu0 %28
    %30 = vrot.lane.b32.xlu0 %v25, 96
    %v31 = vpop.permute.xlu0 %30
    %v34 = vadd.f32 %v24, %v29
    %v35 = vadd.f32 %v25, %v31
    %36 = vrot.lane.b32.xlu0 %v24, 64
    %v37 = vpop.permute.xlu0 %36
    %38 = vrot.lane.b32.xlu0 %v25, 64
    %v39 = vpop.permute.xlu0 %38
    %v42 = vadd.f32 %v34, %v37
    %v43 = vadd.f32 %v35, %v39
    %44 = vrot.lane.b32.xlu0 %v24, 32
    %v45 = vpop.permute.xlu0 %44
    %46 = vrot.lane.b32.xlu0 %v25, 32
    %v47 = vpop.permute.xlu0 %46
    %v50 = vadd.f32 %v42, %v45
    %v51 = vadd.f32 %v43, %v47
    %v52 = vmul.f32 %v24, %v24
    %v53 = vmul.f32 %v25, %v25
    %54 = vadd.xlane.f32.xlu0 %v52
    %v55 = vpop.xlane.xlu0 %54
    %vm56 = vcmask 1041408
    %v57 = vsel %vm56, %v53, 0.0
    %58 = vadd.xlane.f32.xlu0 %v57
    %v59 = vpop.xlane.xlu0 %58
    %v60 = vmul.f32 %v50, %v50
    %v61 = vmul.f32 %v51, %v51
    %vm62 = vcmask 261120
    %v63 = vsel %vm62, %v60, 0.0
    %64 = vadd.xlane.f32.xlu0 %v63
    %v65 = vpop.xlane.xlu0 %64
    %vm66 = vcmask 254976
    %v67 = vsel %vm66, %v61, 0.0
    %68 = vadd.xlane.f32.xlu0 %v67
    %v69 = vpop.xlane.xlu0 %68
    %v70 = vsub.f32 %v65, %v55
    %v71 = vsub.f32 %v69, %v59
    %v72 = vmul.f32 %v70, 0.5
    %v73 = vmul.f32 %v71, 0.5
    %vm74 = vcmask 7168
    %75 = vst.msk [vmem:[%s1] sm:$0xff] %vm74, %v72
    %vm76 = vcmask 1024
    %77 = vst.msk [vmem:[%s1 + $0x8] sm:$0x3] %vm76, %v73
    // Predicated region
    $region10: #{tpu_custom_call.1} parent=1 // pred_check
      _
    $region11: #{tpu_custom_call.1} parent=1 // pred_check_branch
      %79 = sbr.rel (0) target = $region13
    $region12: #{tpu_custom_call.1} parent=1 // pred_region
      _
    $region13: #{tpu_custom_call.1} parent=1 // pred_fallthru
      _
    // Predicated region
    $region14: #{tpu_custom_call.1} parent=1 // pred_check
      _
    $region15: #{tpu_custom_call.1} parent=1 // pred_check_branch
      %81 = sbr.rel (0) target = $region17
    $region16: #{tpu_custom_call.1} parent=1 // pred_region
      _
    $region17: #{tpu_custom_call.1} parent=1 // pred_fallthru
      _
    %82 = vsyncpa [#allocation3], 1

</llo_original>
